<compile_context>
chip_gen: v7x
topology: tpu7x:2x2x1
jax: 0.10.0
libtpu: 0.0.40
codegen_flags: <defaults>
</compile_context>

<pallas_src>
import functools

import jax
import jax.numpy as jnp
from jax.experimental import pallas as pl
from jax.experimental.pallas import tpu as pltpu


# ----------------------------------------------------------------------------- kernel
def _critic_kernel(x_ref, w1_ref, b1_ref, w2_ref, w3_ref, b3_ref, out_ref):
    # x_ref:  (TB, 2*num_inputs) f32   raw flattened states (conv already folded away)
    # w1_ref: (2*num_inputs, h1) bf16  conv-folded Linear-1 weight
    # b1_ref: (1, h1)            f32   conv-folded Linear-1 bias
    # w2_ref: (h1, h2)           bf16  Linear-2 weight (transposed)
    # w3_ref: (1, h2)            f32   Linear-3 weight as a row
    # b3_ref: (1,)               f32   Linear-3 bias (SMEM scalar)
    # out_ref:(TB, 1)            f32   per-state value
    xb = x_ref[...].astype(jnp.bfloat16)
    h1 = jnp.maximum(
        jnp.dot(xb, w1_ref[...], preferred_element_type=jnp.float32) + b1_ref[...],
        0.0)
    h2 = jnp.maximum(
        jnp.dot(h1.astype(jnp.bfloat16), w2_ref[...],
                preferred_element_type=jnp.float32),
        0.0)
    # Linear(h2, 1): VPU multiply + cross-lane reduce (avoids an N=1 MXU round trip).
    out_ref[...] = jnp.sum(h2 * w3_ref[...], axis=-1, keepdims=True) + b3_ref[0]


# --------------------------------------------------------------------------- wrappers
def fold_params(raw_params, *, weight_dtype=jnp.bfloat16):
    """PyTorch-layout params -> kernel params (Conv1d folded into Linear #1)."""
    conv_w, conv_b, w1, w2, w3, b3 = raw_params
    h1, num_inputs = w1.shape
    w1t = jnp.transpose(w1).astype(jnp.float32)                 # (num_inputs, h1)
    cw = conv_w.reshape(2).astype(jnp.float32)                  # (2,)
    # W1f[2n+c, :] = cw[c] * W1^T[n, :]
    w1f = (w1t[:, None, :] * cw[None, :, None]).reshape(2 * num_inputs, h1)
    b1f = (conv_b.reshape(()) * jnp.sum(w1t, axis=0)).reshape(1, h1)
    return (
        w1f.astype(weight_dtype),                               # (2*num_inputs, h1)
        b1f.astype(jnp.float32),                                # (1, h1)
        jnp.transpose(w2).astype(weight_dtype),                 # (h1, h2)
        w3.reshape(1, -1).astype(jnp.float32),                  # (1, h2)
        b3.reshape(1).astype(jnp.float32),                      # (1,)
    )


@functools.partial(jax.jit, static_argnames=("batch_tile",))
def critic_values(xs, kparams, *, batch_tile=8):
    """Batched critic: xs (B, 2*num_inputs) f32 -> (B,) values."""
    w1f, b1f, w2t, w3r, b3 = kparams
    B, K = xs.shape
    two_n, h1 = w1f.shape
    h2 = w2t.shape[1]
    assert K == two_n, "each state must have 2*num_inputs elements"

    tb = batch_tile
    bp = ((B + tb - 1) // tb) * tb                               # pad batch to tile
    xs = xs.astype(jnp.float32)
    if bp != B:
        xs = jnp.pad(xs, ((0, bp - B), (0, 0)))

    def _resident(shape):                                        # whole array, kept in VMEM
        return pl.BlockSpec(shape, lambda i: (0,) * len(shape))

    out = pl.pallas_call(
        _critic_kernel,
        out_shape=jax.ShapeDtypeStruct((bp, 1), jnp.float32),
        grid=(bp // tb,),
        in_specs=[
            pl.BlockSpec((tb, two_n), lambda i: (i, 0)),         # states, batch-tiled
            _resident((two_n, h1)),                              # W1f (bf16)
            _resident((1, h1)),                                  # b1f
            _resident((h1, h2)),                                 # W2t (bf16)
            _resident((1, h2)),                                  # w3 row
            pl.BlockSpec(memory_space=pltpu.MemorySpace.SMEM),   # b3 scalar
        ],
        out_specs=pl.BlockSpec((tb, 1), lambda i: (i, 0)),
        compiler_params=pltpu.CompilerParams(
            dimension_semantics=("parallel",)),                  # split batch across TCs (v7x)
    )(xs, w1f, b1f, w2t, w3r, b3)
    return out[:B, 0]


def critic_forward(x, kparams):
    """Single state, matches the PyTorch module exactly: returns shape (1,)."""
    return critic_values(jnp.reshape(x, (1, -1)), kparams)


# ------------------------------------------------------------------- params / reference
def init_params(key, num_inputs, hidden1, hidden2):
    """PyTorch-layout parameters."""
    ks = jax.random.split(key, 6)
    s = 0.1
    conv_w = jax.random.normal(ks[0], (1, 2, 1), jnp.float32) * s   # Conv1d(2,1,1).weight
    conv_b = jax.random.normal(ks[1], (1,), jnp.float32) * s        # Conv1d(2,1,1).bias
    w1 = jax.random.normal(ks[2], (hidden1, num_inputs), jnp.float32) * s  # Linear1 (no bias)
    w2 = jax.random.normal(ks[3], (hidden2, hidden1), jnp.float32) * s     # Linear2 (no bias)
    w3 = jax.random.normal(ks[4], (1, hidden2), jnp.float32) * s           # Linear3.weight
    b3 = jax.random.normal(ks[5], (1,), jnp.float32) * s                   # Linear3.bias
    return conv_w, conv_b, w1, w2, w3, b3


def critic_reference(x, raw_params):
    """Pure-JAX f32 reference for ONE state, mirroring the PyTorch module exactly."""
    conv_w, conv_b, w1, w2, w3, b3 = raw_params
    num_inputs = w1.shape[1]
    xp = jnp.reshape(x, (num_inputs, 2)).astype(jnp.float32)     # reshape(-1, 2, 1) squeezed
    h0 = xp @ conv_w[0, :, 0] + conv_b[0]                        # Conv1d(2,1,1) + Flatten
    h1 = jnp.maximum(h0 @ w1.T, 0.0)
    h2 = jnp.maximum(h1 @ w2.T, 0.0)
    return (h2 @ w3[0] + b3[0]).reshape(1)


# ------------------------------------------------------------------------------- main
if __name__ == "__main__":
    num_inputs, hidden1, hidden2 = 128, 64, 32
    batch = 16

    key = jax.random.PRNGKey(0)
    kx, kp = jax.random.split(key)
    raw = init_params(kp, num_inputs, hidden1, hidden2)
    kparams = fold_params(raw)                                   # bf16 weights, conv folded

    # Batch of flattened env states (each has 2*num_inputs elements).
    xs = jax.random.normal(kx, (batch, 2 * num_inputs), jnp.float32)

    vals = jax.block_until_ready(critic_values(xs, kparams, batch_tile=8))
    ref = jax.vmap(lambda r: critic_reference(r, raw))(xs)[:, 0]
    assert vals.shape == (batch,)
    # bf16 weights/activations (f32 accumulate) -> compare to the f32 PyTorch-exact ref.
    assert jnp.allclose(vals, ref, rtol=5e-2, atol=5e-2), (vals, ref)

    # Single-state API matching the PyTorch module's output shape (1,).
    v0 = jax.block_until_ready(critic_forward(xs[0], kparams))
    assert v0.shape == (1,)
    assert jnp.allclose(v0, ref[0], rtol=5e-2, atol=5e-2), (v0, ref[0])

    print("KERNEL_OK")
</pallas_src>

<mosaic_0001>
module attributes {stable_mosaic.version = 11 : i64} {
  func.func @_critic_kernel(%arg0: i32, %arg1: memref<8x256xf32, #tpu.memory_space<vmem>>, %arg2: memref<256x64xbf16, #tpu.memory_space<vmem>>, %arg3: memref<1x64xf32, #tpu.memory_space<vmem>>, %arg4: memref<64x32xbf16, #tpu.memory_space<vmem>>, %arg5: memref<1x32xf32, #tpu.memory_space<vmem>>, %arg6: memref<1xf32, #tpu.memory_space<smem>>, %arg7: memref<8x1xf32, #tpu.memory_space<vmem>>) attributes {dimension_semantics = [#tpu.dimension_semantics<parallel>], iteration_bounds = array<i64: 2>, scalar_prefetch = 0 : i64, scratch_operands = 0 : i64, tpu.core_type = #tpu.core_type<tc>, window_params = [{transform_indices = @transform_0, window_bounds = array<i64: 8, 256>}, {pipeline_mode = #tpu.pipeline_mode<synchronous>, transform_indices = @transform_1, window_bounds = array<i64: 256, 64>}, {pipeline_mode = #tpu.pipeline_mode<synchronous>, transform_indices = @transform_2, window_bounds = array<i64: 1, 64>}, {pipeline_mode = #tpu.pipeline_mode<synchronous>, transform_indices = @transform_3, window_bounds = array<i64: 64, 32>}, {pipeline_mode = #tpu.pipeline_mode<synchronous>, transform_indices = @transform_4, window_bounds = array<i64: 1, 32>}, {transform_indices = @transform_5, window_bounds = array<i64: 1>}, {transform_indices = @transform_6, window_bounds = array<i64: 8, 1>}]} {
    %c0 = arith.constant 0 : index
    %c0_0 = arith.constant 0 : index
    %0 = vector.load %arg1[%c0, %c0_0] : memref<8x256xf32, #tpu.memory_space<vmem>>, vector<8x256xf32>
    %1 = arith.truncf %0 : vector<8x256xf32> to vector<8x256xbf16>
    %c0_1 = arith.constant 0 : index
    %c0_2 = arith.constant 0 : index
    %2 = vector.load %arg2[%c0_1, %c0_2] : memref<256x64xbf16, #tpu.memory_space<vmem>>, vector<256x64xbf16>
    %cst = arith.constant dense<0.000000e+00> : vector<8x64xf32>
    %3 = tpu.matmul %1, %2, %cst {dimension_numbers = #tpu.dot_dimension_numbers<[1], [0], [0], [1], [0, 0, 1, 1], [], []>} : vector<8x256xbf16>, vector<256x64xbf16>, vector<8x64xf32> -> vector<8x64xf32>
    %c0_3 = arith.constant 0 : index
    %c0_4 = arith.constant 0 : index
    %4 = vector.load %arg3[%c0_3, %c0_4] : memref<1x64xf32, #tpu.memory_space<vmem>>, vector<1x64xf32>
    %5 = vector.broadcast %4 : vector<1x64xf32> to vector<8x64xf32>
    %6 = arith.addf %3, %5 : vector<8x64xf32>
    %cst_5 = arith.constant 0.000000e+00 : f32
    %7 = vector.broadcast %cst_5 : f32 to vector<8x64xf32>
    %8 = arith.maximumf %6, %7 : vector<8x64xf32>
    %9 = arith.truncf %8 : vector<8x64xf32> to vector<8x64xbf16>
    %c0_6 = arith.constant 0 : index
    %c0_7 = arith.constant 0 : index
    %10 = vector.load %arg4[%c0_6, %c0_7] : memref<64x32xbf16, #tpu.memory_space<vmem>>, vector<64x32xbf16>
    %cst_8 = arith.constant dense<0.000000e+00> : vector<8x32xf32>
    %11 = tpu.matmul %9, %10, %cst_8 {dimension_numbers = #tpu.dot_dimension_numbers<[1], [0], [0], [1], [0, 0, 1, 1], [], []>} : vector<8x64xbf16>, vector<64x32xbf16>, vector<8x32xf32> -> vector<8x32xf32>
    %cst_9 = arith.constant 0.000000e+00 : f32
    %12 = vector.broadcast %cst_9 : f32 to vector<8x32xf32>
    %13 = arith.maximumf %11, %12 : vector<8x32xf32>
    %c0_10 = arith.constant 0 : index
    %c0_11 = arith.constant 0 : index
    %14 = vector.load %arg5[%c0_10, %c0_11] : memref<1x32xf32, #tpu.memory_space<vmem>>, vector<1x32xf32>
    %15 = vector.broadcast %14 : vector<1x32xf32> to vector<8x32xf32>
    %16 = arith.mulf %13, %15 : vector<8x32xf32>
    %cst_12 = arith.constant dense<0.000000e+00> : vector<8xf32>
    %17 = vector.multi_reduction <add>, %16, %cst_12 [1] : vector<8x32xf32> to vector<8xf32>
    %18 = vector.shape_cast %17 : vector<8xf32> to vector<8x1xf32>
    %c0_13 = arith.constant 0 : index
    %19 = memref.load %arg6[%c0_13] : memref<1xf32, #tpu.memory_space<smem>>
    %20 = vector.broadcast %19 : f32 to vector<8x1xf32>
    %21 = arith.addf %18, %20 : vector<8x1xf32>
    %c0_14 = arith.constant 0 : index
    %c0_15 = arith.constant 0 : index
    %22 = vector.load %arg7[%c0_14, %c0_15] : memref<8x1xf32, #tpu.memory_space<vmem>>, vector<8x1xf32>
    tpu.vector_store %arg7[%c0_14, %c0_15], %21 {strides = array<i32>} : memref<8x1xf32, #tpu.memory_space<vmem>>, vector<8x1xf32>,
    return
  }
  func.func @transform_0(%arg0: i32) -> (i32, i32) {
    %c0_i32 = arith.constant 0 : i32
    %c0_i32_0 = arith.constant 0 : i32
    return %arg0, %c0_i32 : i32, i32
  }
  func.func @transform_1(%arg0: i32) -> (i32, i32) {
    %c0_i32 = arith.constant 0 : i32
    %c0_i32_0 = arith.constant 0 : i32
    %c0_i32_1 = arith.constant 0 : i32
    return %c0_i32, %c0_i32_0 : i32, i32
  }
  func.func @transform_2(%arg0: i32) -> (i32, i32) {
    %c0_i32 = arith.constant 0 : i32
    %c0_i32_0 = arith.constant 0 : i32
    %c0_i32_1 = arith.constant 0 : i32
    return %c0_i32, %c0_i32_0 : i32, i32
  }
  func.func @transform_3(%arg0: i32) -> (i32, i32) {
    %c0_i32 = arith.constant 0 : i32
    %c0_i32_0 = arith.constant 0 : i32
    %c0_i32_1 = arith.constant 0 : i32
    return %c0_i32, %c0_i32_0 : i32, i32
  }
  func.func @transform_4(%arg0: i32) -> (i32, i32) {
    %c0_i32 = arith.constant 0 : i32
    %c0_i32_0 = arith.constant 0 : i32
    %c0_i32_1 = arith.constant 0 : i32
    return %c0_i32, %c0_i32_0 : i32, i32
  }
  func.func @transform_5(%arg0: i32) -> i32 {
    %c0_i32 = arith.constant 0 : i32
    %c0_i32_0 = arith.constant 0 : i32
    return %c0_i32 : i32
  }
  func.func @transform_6(%arg0: i32) -> (i32, i32) {
    %c0_i32 = arith.constant 0 : i32
    %c0_i32_0 = arith.constant 0 : i32
    return %arg0, %c0_i32 : i32, i32
  }
}

</mosaic_0001>

<llo_original>
// kernel: critic_values.1
$region0: #{critic_values.1}
  #allocation0 [shape = 'u32[]', space=smem, size = 0x4, offset = 0x4, fixed_abs, tag = 'smem constant byte address 0x4 - core index']
  #allocation1 [shape = 'u32[144,128]{1,0:T(1,128)}', space=vmem, size = 0x12000, scoped, tag = 'internal scratch']
  #allocation2 [shape = 'f32[1]{0:T(128)S(6)}', space=smem, size = 0x200, scoped, tag = 'scoped memory for critic_values.1']
  %s0 = inlined_call_operand.vmem [shape: f32[16,256], index: 0, kind: input, shape index: {}]
  %s1 = inlined_call_operand.vmem [shape: bf16[256,64], index: 1, kind: input, shape index: {}]
  %s2 = inlined_call_operand.vmem [shape: f32[1,64], index: 2, kind: input, shape index: {}]
  %s3 = inlined_call_operand.vmem [shape: bf16[64,32], index: 3, kind: input, shape index: {}]
  %s4 = inlined_call_operand.vmem [shape: f32[1,32], index: 4, kind: input, shape index: {}]
  %s5 = inlined_call_operand.<no memory space> [shape: f32[1], index: 5, kind: input, shape index: {}]
  %s6 = inlined_call_operand.vmem [shape: f32[16,1], index: 6, kind: output, shape index: {}]
  %s7 = sld [smem:[#allocation0]]
  $region57: #{critic_values.1} parent=0
    _
  %s9 = ssub.s32 1, %s7
  %s10 = scalar_select 0, %s9, %s7
  %11 = sst [smem:[#allocation2]] %s5
  loop: start=0, step=1, limit=4
  $region2: #{critic_values.1} parent=0 // loop_pre_header
    _
  $region3: #{critic_values.1} parent=0 // loop_header
    %s13 = sphi 0, %s17
    %p14 = scmp.ge.s32.totalorder %s13, 4
    %s23 = sphi 0, %s25
    %s26 = sphi 0, %s23
    %s27 = sphi 0, %s26
    %s43 = sphi 0, %s27
    %s47 = sphi 0, %s47
    %s49 = sphi 0, %s47
    %s50 = sphi 0, %s49
    %s64 = sphi 0, %s50
    %s68 = sphi 0, %s68
    %s70 = sphi 0, %s68
    %s71 = sphi 0, %s70
    %s85 = sphi 0, %s71
    %s89 = sphi 0, %s89
    %s91 = sphi 0, %s89
    %s92 = sphi 0, %s91
    %s106 = sphi 0, %s92
    %s110 = sphi 0, %s110
    %s112 = sphi 0, %s110
    %s113 = sphi 0, %s112
    %s127 = sphi 0, %s113
    %s131 = sphi 0, %s131
    %s133 = sphi 0, %s131
    %s134 = sphi 0, %s133
    %s148 = sphi 0, %s134
    %s154 = sphi 0, %s156
    %s157 = sphi 0, %s154
    %s158 = sphi 0, %s157
    %s174 = sphi 0, %s158
  $region4: #{critic_values.1} parent=0 // loop_header_branch
    %16 = sbr.rel (%p14) target = $region8
  $region5: #{critic_values.1} parent=0 // loop_body
    %s18 = ssub.s32 %s13, 1
    %s19 = ssub.s32 %s13, 2
    %s20 = sadd.s32 %s13, 1
    %s21 = ssub.s32 %s13, %s20
    %p22 = scmp.eq.s32.totalorder %s21, 0
    %s24 = sadd.s32 %s23, 1
    %s25 = scalar_select %p22, %s23, %s24
    %p28 = pneg %p22
    %p29 = scmp.eq.s32.totalorder %s13, 1
    %p30 = por %p28, %p29
    %p31 = scmp.ne.s32.totalorder %s23, %s26
    %p32 = scmp.eq.s32.totalorder %s13, 0
    %p33 = por %p31, %p32
    %p34 = scmp.ne.s32.totalorder %s23, %s26
    %p35 = scmp.eq.s32.totalorder %s18, 1
    %p36 = por %p34, %p35
    %p37 = scmp.ne.s32.totalorder %s26, %s27
    %p38 = scmp.eq.s32.totalorder %s18, 0
    %p39 = por %p37, %p38
    %p40 = scmp.ne.s32.totalorder %s26, %s27
    %p41 = scmp.eq.s32.totalorder %s19, 1
    %p42 = por %p40, %p41
    %p44 = scmp.ne.s32.totalorder %s27, %s43
    %p45 = scmp.eq.s32.totalorder %s19, 0
    %p46 = por %p44, %p45
    %s48 = sadd.s32 %s47, 1
    %p51 = scmp.eq.s32.totalorder %s13, 1
    %p52 = scmp.ne.s32.totalorder %s47, %s49
    %p53 = scmp.eq.s32.totalorder %s13, 0
    %p54 = por %p52, %p53
    %p55 = scmp.ne.s32.totalorder %s47, %s49
    %p56 = scmp.eq.s32.totalorder %s18, 1
    %p57 = por %p55, %p56
    %p58 = scmp.ne.s32.totalorder %s49, %s50
    %p59 = scmp.eq.s32.totalorder %s18, 0
    %p60 = por %p58, %p59
    %p61 = scmp.ne.s32.totalorder %s49, %s50
    %p62 = scmp.eq.s32.totalorder %s19, 1
    %p63 = por %p61, %p62
    %p65 = scmp.ne.s32.totalorder %s50, %s64
    %p66 = scmp.eq.s32.totalorder %s19, 0
    %p67 = por %p65, %p66
    %s69 = sadd.s32 %s68, 1
    %p72 = scmp.eq.s32.totalorder %s13, 1
    %p73 = scmp.ne.s32.totalorder %s68, %s70
    %p74 = scmp.eq.s32.totalorder %s13, 0
    %p75 = por %p73, %p74
    %p76 = scmp.ne.s32.totalorder %s68, %s70
    %p77 = scmp.eq.s32.totalorder %s18, 1
    %p78 = por %p76, %p77
    %p79 = scmp.ne.s32.totalorder %s70, %s71
    %p80 = scmp.eq.s32.totalorder %s18, 0
    %p81 = por %p79, %p80
    %p82 = scmp.ne.s32.totalorder %s70, %s71
    %p83 = scmp.eq.s32.totalorder %s19, 1
    %p84 = por %p82, %p83
    %p86 = scmp.ne.s32.totalorder %s71, %s85
    %p87 = scmp.eq.s32.totalorder %s19, 0
    %p88 = por %p86, %p87
    %s90 = sadd.s32 %s89, 1
    %p93 = scmp.eq.s32.totalorder %s13, 1
    %p94 = scmp.ne.s32.totalorder %s89, %s91
    %p95 = scmp.eq.s32.totalorder %s13, 0
    %p96 = por %p94, %p95
    %p97 = scmp.ne.s32.totalorder %s89, %s91
    %p98 = scmp.eq.s32.totalorder %s18, 1
    %p99 = por %p97, %p98
    %p100 = scmp.ne.s32.totalorder %s91, %s92
    %p101 = scmp.eq.s32.totalorder %s18, 0
    %p102 = por %p100, %p101
    %p103 = scmp.ne.s32.totalorder %s91, %s92
    %p104 = scmp.eq.s32.totalorder %s19, 1
    %p105 = por %p103, %p104
    %p107 = scmp.ne.s32.totalorder %s92, %s106
    %p108 = scmp.eq.s32.totalorder %s19, 0
    %p109 = por %p107, %p108
    %s111 = sadd.s32 %s110, 1
    %p114 = scmp.eq.s32.totalorder %s13, 1
    %p115 = scmp.ne.s32.totalorder %s110, %s112
    %p116 = scmp.eq.s32.totalorder %s13, 0
    %p117 = por %p115, %p116
    %p118 = scmp.ne.s32.totalorder %s110, %s112
    %p119 = scmp.eq.s32.totalorder %s18, 1
    %p120 = por %p118, %p119
    %p121 = scmp.ne.s32.totalorder %s112, %s113
    %p122 = scmp.eq.s32.totalorder %s18, 0
    %p123 = por %p121, %p122
    %p124 = scmp.ne.s32.totalorder %s112, %s113
    %p125 = scmp.eq.s32.totalorder %s19, 1
    %p126 = por %p124, %p125
    %p128 = scmp.ne.s32.totalorder %s113, %s127
    %p129 = scmp.eq.s32.totalorder %s19, 0
    %p130 = por %p128, %p129
    %s132 = sadd.s32 %s131, 1
    %p135 = scmp.eq.s32.totalorder %s13, 1
    %p136 = scmp.ne.s32.totalorder %s131, %s133
    %p137 = scmp.eq.s32.totalorder %s13, 0
    %p138 = por %p136, %p137
    %p139 = scmp.ne.s32.totalorder %s131, %s133
    %p140 = scmp.eq.s32.totalorder %s18, 1
    %p141 = por %p139, %p140
    %p142 = scmp.ne.s32.totalorder %s133, %s134
    %p143 = scmp.eq.s32.totalorder %s18, 0
    %p144 = por %p142, %p143
    %p145 = scmp.ne.s32.totalorder %s133, %s134
    %p146 = scmp.eq.s32.totalorder %s19, 1
    %p147 = por %p145, %p146
    %p149 = scmp.ne.s32.totalorder %s134, %s148
    %p150 = scmp.eq.s32.totalorder %s19, 0
    %p151 = por %p149, %p150
    %s152 = ssub.s32 %s13, %s20
    %p153 = scmp.eq.s32.totalorder %s152, 0
    %s155 = sadd.s32 %s154, 1
    %s156 = scalar_select %p153, %s154, %s155
    %p159 = pneg %p153
    %p160 = scmp.eq.s32.totalorder %s13, 1
    %p161 = por %p159, %p160
    %p162 = scmp.ne.s32.totalorder %s154, %s157
    %p163 = scmp.eq.s32.totalorder %s13, 0
    %p164 = por %p162, %p163
    %p165 = scmp.ne.s32.totalorder %s154, %s157
    %p166 = scmp.eq.s32.totalorder %s18, 1
    %p167 = por %p165, %p166
    %p168 = scmp.ne.s32.totalorder %s157, %s158
    %p169 = scmp.eq.s32.totalorder %s18, 0
    %p170 = por %p168, %p169
    %p171 = scmp.ne.s32.totalorder %s157, %s158
    %p172 = scmp.eq.s32.totalorder %s19, 1
    %p173 = por %p171, %p172
    %p175 = scmp.ne.s32.totalorder %s158, %s174
    %p176 = scmp.eq.s32.totalorder %s19, 0
    %p177 = por %p175, %p176
    %p178 = scmp.le.s32.totalorder 1, %s13
    %p179 = scmp.lt.s32.totalorder %s13, 3
    %p180 = pnand %p178, %p179
    %p181 = pneg %p180
    // Predicated region
    $region9: #{critic_values.1} parent=5 // pred_check
      _
    $region10: #{critic_values.1} parent=5 // pred_check_branch
      %183 = sbr.rel (%p180) target = $region12
    $region11: #{critic_values.1} parent=5 // pred_region
      %s184 = ssub.s32 %s13, 1
      // Predicated region
      $region13: #{critic_values.1} parent=11 // pred_check
        %p185 = pneg %p60
      $region14: #{critic_values.1} parent=11 // pred_check_branch
        %187 = sbr.rel (%p185) target = $region16
      $region15: #{critic_values.1} parent=11 // pred_region
        _
      $region16: #{critic_values.1} parent=11 // pred_fallthru
        _
      // Predicated region
      $region17: #{critic_values.1} parent=11 // pred_check
        %p188 = pneg %p81
      $region18: #{critic_values.1} parent=11 // pred_check_branch
        %190 = sbr.rel (%p188) target = $region20
      $region19: #{critic_values.1} parent=11 // pred_region
        _
      $region20: #{critic_values.1} parent=11 // pred_fallthru
        _
      // Predicated region
      $region21: #{critic_values.1} parent=11 // pred_check
        %p191 = pneg %p102
      $region22: #{critic_values.1} parent=11 // pred_check_branch
        %193 = sbr.rel (%p191) target = $region24
      $region23: #{critic_values.1} parent=11 // pred_region
        _
      $region24: #{critic_values.1} parent=11 // pred_fallthru
        _
      // Predicated region
      $region25: #{critic_values.1} parent=11 // pred_check
        %p194 = pneg %p123
      $region26: #{critic_values.1} parent=11 // pred_check_branch
        %196 = sbr.rel (%p194) target = $region28
      $region27: #{critic_values.1} parent=11 // pred_region
        _
      $region28: #{critic_values.1} parent=11 // pred_fallthru
        _
      // Predicated region
      $region29: #{critic_values.1} parent=11 // pred_check
        %p197 = pneg %p144
      $region30: #{critic_values.1} parent=11 // pred_check_branch
        %199 = sbr.rel (%p197) target = $region32
      $region31: #{critic_values.1} parent=11 // pred_region
        _
      $region32: #{critic_values.1} parent=11 // pred_fallthru
        _
    $region12: #{critic_values.1} parent=5 // pred_fallthru
      _
    %p200 = scmp.lt.s32.totalorder %s13, 2
    // Predicated region
    $region33: #{critic_values.1} parent=5 // pred_check
      %p201 = pneg %p200
    $region34: #{critic_values.1} parent=5 // pred_check_branch
      %203 = sbr.rel (%p201) target = $region36
    $region35: #{critic_values.1} parent=5 // pred_region
      // Predicated region
      $region37: #{critic_values.1} parent=35 // pred_check
        %p204 = pneg %p33
      $region38: #{critic_values.1} parent=35 // pred_check_branch
        %206 = sbr.rel (%p204) target = $region40
      $region39: #{critic_values.1} parent=35 // pred_region
        %p207 = scmp.lt.s32.totalorder %s13, 1
        %s208 = scalar_select %p207, %s13, 1
        %s209 = smul.addr %s208, 2
        %s210 = smul.addr %s209, 8
        %s211 = scalar_lea.vmem %s0, %s210
      $region40: #{critic_values.1} parent=35 // pred_fallthru
        _
    $region36: #{critic_values.1} parent=5 // pred_fallthru
      _
    %p212 = scmp.le.s32.totalorder 1, %s13
    %p213 = scmp.lt.s32.totalorder %s13, 3
    %p214 = pnand %p212, %p213
    %p215 = pneg %p214
    // Predicated region
    $region41: #{critic_values.1} parent=5 // pred_check
      _
    $region42: #{critic_values.1} parent=5 // pred_check_branch
      %217 = sbr.rel (%p214) target = $region44
    $region43: #{critic_values.1} parent=5 // pred_region
      %s218 = ssub.s32 %s13, 1
      %p219 = scmp.lt.s32.totalorder %s18, 1
      %s220 = scalar_select %p219, %s18, 1
      %s221 = smul.addr %s220, 2
      %s222 = smul.addr %s221, 8
      %s223 = scalar_lea.vmem %s0, %s222
      %p224 = pneg %p39
      %p225 = pneg %p36
      %p226 = pneg %p60
      %p227 = pneg %p57
      %p228 = pneg %p81
      %p229 = pneg %p78
      %p230 = pneg %p102
      %p231 = pneg %p99
      %p232 = pneg %p123
      %p233 = pneg %p120
      %p234 = pneg %p144
      %p235 = pneg %p141
      %p236 = pneg %p170
      %p237 = pneg %p167
      %p238 = scmp.lt.s32.totalorder %s18, 1
      %s239 = scalar_select %p238, %s18, 1
      %s240 = smul.addr %s239, 8
      %s241 = scalar_lea.vmem %s6, %s240
      %p242 = scmp.lt.s32.totalorder %s18, 1
      %s243 = scalar_select %p242, %s18, 1
      %s244 = smul.addr %s243, 2
      %s245 = smul.addr %s244, 8
      %s246 = scalar_lea.vmem %s0, %s245
      %p247 = scmp.lt.s32.totalorder %s18, 1
      %s248 = scalar_select %p247, %s18, 1
      %s249 = smul.addr %s248, 8
      %s250 = scalar_lea.vmem %s6, %s249
      %v252 = vld [vmem:[%s246] sm:$0xff]
      %v253 = vld [vmem:[%s246 + $0x8] sm:$0xff]
      %v254 = vpack.c.bf16 %v252, %v252
      %v255 = vpack.c.bf16 %v253, %v253
      %v256 = vld [vmem:[%s1] sm:$0xf]
      %v257 = vld [vmem:[%s1 + $0x4] sm:$0xf]
      %v258 = vld [vmem:[%s1 + $0x8] sm:$0xf]
      %v259 = vld [vmem:[%s1 + $0xc] sm:$0xf]
      %v260 = vld [vmem:[%s1 + $0x10] sm:$0xf]
      %v261 = vld [vmem:[%s1 + $0x14] sm:$0xf]
      %v262 = vld [vmem:[%s1 + $0x18] sm:$0xf]
      %v263 = vld [vmem:[%s1 + $0x1c] sm:$0xf]
      %v264 = vld [vmem:[%s1 + $0x20] sm:$0xf]
      %v265 = vld [vmem:[%s1 + $0x24] sm:$0xf]
      %v266 = vld [vmem:[%s1 + $0x28] sm:$0xf]
      %v267 = vld [vmem:[%s1 + $0x2c] sm:$0xf]
      %v268 = vld [vmem:[%s1 + $0x30] sm:$0xf]
      %v269 = vld [vmem:[%s1 + $0x34] sm:$0xf]
      %v270 = vld [vmem:[%s1 + $0x38] sm:$0xf]
      %v271 = vld [vmem:[%s1 + $0x3c] sm:$0xf]
      %v272 = vld [vmem:[%s1 + $0x40] sm:$0xf]
      %v273 = vld [vmem:[%s1 + $0x44] sm:$0xf]
      %v274 = vld [vmem:[%s1 + $0x48] sm:$0xf]
      %v275 = vld [vmem:[%s1 + $0x4c] sm:$0xf]
      %v276 = vld [vmem:[%s1 + $0x50] sm:$0xf]
      %v277 = vld [vmem:[%s1 + $0x54] sm:$0xf]
      %v278 = vld [vmem:[%s1 + $0x58] sm:$0xf]
      %v279 = vld [vmem:[%s1 + $0x5c] sm:$0xf]
      %v280 = vld [vmem:[%s1 + $0x60] sm:$0xf]
      %v281 = vld [vmem:[%s1 + $0x64] sm:$0xf]
      %v282 = vld [vmem:[%s1 + $0x68] sm:$0xf]
      %v283 = vld [vmem:[%s1 + $0x6c] sm:$0xf]
      %v284 = vld [vmem:[%s1 + $0x70] sm:$0xf]
      %v285 = vld [vmem:[%s1 + $0x74] sm:$0xf]
      %v286 = vld [vmem:[%s1 + $0x78] sm:$0xf]
      %v287 = vld [vmem:[%s1 + $0x7c] sm:$0xf]
      %v288 = vld [vmem:[%s2] sm:$0x1]
      %v290 = vlaneseq
      %v291 = vshrl.u32 %v290, 7
      %v292 = vsub.s32 0, %v291
      %v293 = vrot.slane %v288, %v292
      %v327 = vunpack.c.l.b16 %v256
      %v328 = vunpack.c.l.b16 %v257
      %v329 = vunpack.c.l.b16 %v258
      %v330 = vunpack.c.l.b16 %v259
      %v331 = vunpack.c.l.b16 %v260
      %v332 = vunpack.c.l.b16 %v261
      %v333 = vunpack.c.l.b16 %v262
      %v334 = vunpack.c.l.b16 %v263
      %v335 = vunpack.c.l.b16 %v264
      %v336 = vunpack.c.l.b16 %v265
      %v337 = vunpack.c.l.b16 %v266
      %v338 = vunpack.c.l.b16 %v267
      %v339 = vunpack.c.l.b16 %v268
      %v340 = vunpack.c.l.b16 %v269
      %v341 = vunpack.c.l.b16 %v270
      %v342 = vunpack.c.l.b16 %v271
      %v343 = vunpack.c.l.b16 %v272
      %v344 = vunpack.c.l.b16 %v273
      %v345 = vunpack.c.l.b16 %v274
      %v346 = vunpack.c.l.b16 %v275
      %v347 = vunpack.c.l.b16 %v276
      %v348 = vunpack.c.l.b16 %v277
      %v349 = vunpack.c.l.b16 %v278
      %v350 = vunpack.c.l.b16 %v279
      %v351 = vunpack.c.l.b16 %v280
      %v352 = vunpack.c.l.b16 %v281
      %v353 = vunpack.c.l.b16 %v282
      %v354 = vunpack.c.l.b16 %v283
      %v355 = vunpack.c.l.b16 %v284
      %v356 = vunpack.c.l.b16 %v285
      %v357 = vunpack.c.l.b16 %v286
      %v358 = vunpack.c.l.b16 %v287
      %v359 = vpack.c.b16 %v328, %v327
      %v360 = vpack.c.b16 %v330, %v329
      %v361 = vpack.c.b16 %v332, %v331
      %v362 = vpack.c.b16 %v334, %v333
      %v363 = vpack.c.b16 %v336, %v335
      %v364 = vpack.c.b16 %v338, %v337
      %v365 = vpack.c.b16 %v340, %v339
      %v366 = vpack.c.b16 %v342, %v341
      %v367 = vpack.c.b16 %v344, %v343
      %v368 = vpack.c.b16 %v346, %v345
      %v369 = vpack.c.b16 %v348, %v347
      %v370 = vpack.c.b16 %v350, %v349
      %v371 = vpack.c.b16 %v352, %v351
      %v372 = vpack.c.b16 %v354, %v353
      %v373 = vpack.c.b16 %v356, %v355
      %v374 = vpack.c.b16 %v358, %v357
      %391 = vmatprep.subr.bf16.mxu0 0
      %392 = vmatpush1.bf16.msra.mxu0 %v359
      %393 = vmatprep.subr.bf16.mxu0 0
      %394 = vmatpush1.bf16.msra.mxu0 %v360
      %395 = vmatprep.subr.bf16.mxu0 0
      %396 = vmatpush1.bf16.msra.mxu0 %v361
      %397 = vmatprep.subr.bf16.mxu0 0
      %398 = vmatpush1.bf16.msra.mxu0 %v362
      %399 = vmatprep.subr.bf16.mxu0 0
      %400 = vmatpush1.bf16.msra.mxu0 %v363
      %401 = vmatprep.subr.bf16.mxu0 0
      %402 = vmatpush1.bf16.msra.mxu0 %v364
      %403 = vmatprep.subr.bf16.mxu0 0
      %404 = vmatpush1.bf16.msra.mxu0 %v365
      %405 = vmatprep.subr.bf16.mxu0 0
      %406 = vmatpush1.bf16.msra.mxu0 %v366
      %407 = vmatprep.subr.bf16.mxu0 0
      %408 = vmatpush1.bf16.msra.mxu0 %v367
      %409 = vmatprep.subr.bf16.mxu0 0
      %410 = vmatpush1.bf16.msra.mxu0 %v368
      %411 = vmatprep.subr.bf16.mxu0 0
      %412 = vmatpush1.bf16.msra.mxu0 %v369
      %413 = vmatprep.subr.bf16.mxu0 0
      %414 = vmatpush1.bf16.msra.mxu0 %v370
      %415 = vmatprep.subr.bf16.mxu0 0
      %416 = vmatpush1.bf16.msra.mxu0 %v371
      %417 = vmatprep.subr.bf16.mxu0 0
      %418 = vmatpush1.bf16.msra.mxu0 %v372
      %419 = vmatprep.subr.bf16.mxu0 0
      %420 = vmatpush1.bf16.msra.mxu0 %v373
      %421 = vmatprep.subr.bf16.mxu0 0
      %422 = vmatpush1.bf16.msra.mxu0 %v374
      %423 = vmatprep.mubr.bf16.mxu0 %v255
      %424 = vmatmul.mubr.bf16.gmra.mrb[0].mxu0 %v254
      %v425 = vpop.f32.mrb[0].mxu0
      %v426 = vadd.f32 %v293, %v425
      %v427 = vpop.f32.mrb[0].mxu0
      %v428 = vpop.f32.mrb[0].mxu0
      %v429 = vpop.f32.mrb[0].mxu0
      %430 = vdwg.mxu0
      %v431 = vmax.f32 %v426, 0.0
      %v432 = vpack.c.bf16 %v431, %v431
      %v433 = vld [vmem:[%s3] sm:$0xf]
      %v434 = vld [vmem:[%s3 + $0x4] sm:$0xf]
      %v435 = vld [vmem:[%s3 + $0x8] sm:$0xf]
      %v436 = vld [vmem:[%s3 + $0xc] sm:$0xf]
      %v437 = vld [vmem:[%s3 + $0x10] sm:$0xf]
      %v438 = vld [vmem:[%s3 + $0x14] sm:$0xf]
      %v439 = vld [vmem:[%s3 + $0x18] sm:$0xf]
      %v440 = vld [vmem:[%s3 + $0x1c] sm:$0xf]
      %v449 = vunpack.c.l.b16 %v433
      %v450 = vunpack.c.l.b16 %v434
      %v451 = vunpack.c.l.b16 %v435
      %v452 = vunpack.c.l.b16 %v436
      %v453 = vunpack.c.l.b16 %v437
      %v454 = vunpack.c.l.b16 %v438
      %v455 = vunpack.c.l.b16 %v439
      %v456 = vunpack.c.l.b16 %v440
      %v457 = vpack.c.b16 %v450, %v449
      %v458 = vpack.c.b16 %v452, %v451
      %v459 = vpack.c.b16 %v454, %v453
      %v460 = vpack.c.b16 %v456, %v455
      %vm465 = vcmask 523264
      %v467 = vsel %vm465, %v432, 0
      %469 = vmatprep.subr.bf16.mxu0 0
      %470 = vmatpush1.bf16.msra.mxu0 %v457
      %471 = vmatprep.subr.bf16.mxu0 0
      %472 = vmatpush1.bf16.msra.mxu0 %v458
      %473 = vmatprep.subr.bf16.mxu0 0
      %474 = vmatpush1.bf16.msra.mxu0 %v459
      %475 = vmatprep.subr.bf16.mxu0 0
      %476 = vmatpush1.bf16.msra.mxu0 %v460
      %477 = vmatprep.subr.bf16.mxu0 0
      %478 = vmatpush1.bf16.msra.mxu0 0
      %479 = vmatprep.subr.bf16.mxu0 0
      %480 = vmatpush1.bf16.msra.mxu0 0
      %481 = vmatprep.subr.bf16.mxu0 0
      %482 = vmatpush1.bf16.msra.mxu0 0
      %483 = vmatprep.subr.bf16.mxu0 0
      %484 = vmatpush1.bf16.msra.mxu0 0
      %485 = vmatprep.subr.bf16.mxu0 0
      %486 = vmatpush1.bf16.msra.mxu0 0
      %487 = vmatprep.subr.bf16.mxu0 0
      %488 = vmatpush1.bf16.msra.mxu0 0
      %489 = vmatprep.subr.bf16.mxu0 0
      %490 = vmatpush1.bf16.msra.mxu0 0
      %491 = vmatprep.subr.bf16.mxu0 0
      %492 = vmatpush1.bf16.msra.mxu0 0
      %493 = vmatprep.subr.bf16.mxu0 0
      %494 = vmatpush1.bf16.msra.mxu0 0
      %495 = vmatprep.subr.bf16.mxu0 0
      %496 = vmatpush1.bf16.msra.mxu0 0
      %497 = vmatprep.subr.bf16.mxu0 0
      %498 = vmatpush1.bf16.msra.mxu0 0
      %499 = vmatprep.subr.bf16.mxu0 0
      %500 = vmatpush1.bf16.msra.mxu0 0
      %501 = vmatprep.mubr.bf16.mxu0 0
      %502 = vmatmul.mubr.bf16.gmra.mrb[0].mxu0 %v467
      %v503 = vpop.f32.mrb[0].mxu0
      %v504 = vadd.f32 0.0, %v503
      %v505 = vpop.f32.mrb[0].mxu0
      %v506 = vpop.f32.mrb[0].mxu0
      %v507 = vpop.f32.mrb[0].mxu0
      %508 = vdwg.mxu0
      %v509 = vmax.f32 %v504, 0.0
      %v510 = vld [vmem:[%s4] sm:$0x1]
      %v512 = vlaneseq
      %v513 = vshrl.u32 %v512, 7
      %v514 = vsub.s32 0, %v513
      %v515 = vrot.slane %v510, %v514
      %v517 = vmul.f32 %v509, %v515
      %vm518 = vcmask 261120
      %v519 = vsel %vm518, %v517, 0.0
      %520 = vadd.xlane.f32.xlu0 %v519
      %v521 = vpop.xlane.xlu0 %520
      %s522 = sld [smem:[#allocation2]]
      %v523 = vstv %s522
      %v524 = vadd.f32 %v521, %v523
      %vm525 = vcmask 7168
      %526 = vst.msk [vmem:[%s250] sm:$0xff] %vm525, %v524
      %p527 = scmp.lt.s32.totalorder %s18, 1
      %s528 = scalar_select %p527, %s18, 1
      %s529 = smul.addr %s528, 8
      %s530 = scalar_lea.vmem %s6, %s529
      // Predicated region
      $region45: #{critic_values.1} parent=43 // pred_check
        %p531 = pneg %p167
      $region46: #{critic_values.1} parent=43 // pred_check_branch
        %533 = sbr.rel (%p531) target = $region48
      $region47: #{critic_values.1} parent=43 // pred_region
        _
      $region48: #{critic_values.1} parent=43 // pred_fallthru
        _
    $region44: #{critic_values.1} parent=5 // pred_fallthru
      _
    %p534 = scmp.le.s32.totalorder 2, %s13
    // Predicated region
    $region49: #{critic_values.1} parent=5 // pred_check
      %p535 = pneg %p534
    $region50: #{critic_values.1} parent=5 // pred_check_branch
      %537 = sbr.rel (%p535) target = $region52
    $region51: #{critic_values.1} parent=5 // pred_region
      %s538 = ssub.s32 %s13, 2
      // Predicated region
      $region53: #{critic_values.1} parent=51 // pred_check
        %p539 = pneg %p173
      $region54: #{critic_values.1} parent=51 // pred_check_branch
        %541 = sbr.rel (%p539) target = $region56
      $region55: #{critic_values.1} parent=51 // pred_region
        %p542 = scmp.lt.s32.totalorder %s19, 1
        %s543 = scalar_select %p542, %s19, 1
        %s544 = smul.addr %s543, 8
        %s545 = scalar_lea.vmem %s6, %s544
      $region56: #{critic_values.1} parent=51 // pred_fallthru
        _
    $region52: #{critic_values.1} parent=5 // pred_fallthru
      _
  $region6: #{critic_values.1} parent=0 // loop_footer
    %s17 = sadd.s32 1, %s13
  $region7: #{critic_values.1} parent=0 // loop_footer_branch
    %12 = sbr.rel target = $region3
  $region8: #{critic_values.1} parent=0 // loop_exit
    _

</llo_original>
